<compile_context>
chip_gen: v7x
topology: tpu7x:2x2x1
jax: 0.10.0
libtpu: 0.0.40
codegen_flags: <defaults>
</compile_context>

<pallas_src>
import functools

import jax
import jax.numpy as jnp
from jax.experimental import pallas as pl
from jax.experimental.pallas import tpu as pltpu

_EPS = 1e-5


def _resblock_kernel(x_ref, w1_ref, w2_ref, w3_ref, consts_ref, o_ref, *, channels):
    H, L = x_ref.shape                          # L = N*W*C (lane axis)
    inv_n = 1.0 / float(H * (L // channels))    # 1 / (N*H*W) BN sample count
    bf16 = jnp.bfloat16
    x = x_ref[...]                              # (H, L) f32

    def mm(a_bf16, w_ref):
        # single-pass bf16 MXU matmul, f32 accumulation
        return jnp.dot(a_bf16, w_ref[...], preferred_element_type=jnp.float32)

    def lane_allreduce(v):
        # sum over the same-channel lane class (stride = channels) with a
        # log2(N*W) rotate-and-add tree; rolls go to the XLU slot.
        step = channels
        while step < L:
            v = v + pltpu.roll(v, shift=step, axis=1)
            step *= 2
        return v

    def bn_relu(h, g_lane, be_lane):
        # training-mode BatchNorm (biased batch variance), one-pass stats, + ReLU.
        # Both stats packed into a single (2, L) vreg -> ONE roll tree (perf review #2).
        stats = jnp.concatenate([jnp.sum(h, axis=0, keepdims=True),
                                 jnp.sum(h * h, axis=0, keepdims=True)], axis=0)
        stats = lane_allreduce(stats)
        mean = stats[0:1, :] * inv_n
        var = stats[1:2, :] * inv_n - mean * mean
        scale = g_lane * jax.lax.rsqrt(var + _EPS)
        shift = be_lane - mean * scale
        return jnp.maximum(h * scale + shift, 0.0)

    # ---- conv1x1 #1 (block-diagonal matmul) + BN + ReLU ----
    # (conv bias b1 is mathematically absorbed by training-mode BN -> folded away)
    h = bn_relu(mm(x.astype(bf16), w1_ref), consts_ref[0:1, :], consts_ref[1:2, :])

    # ---- conv3x3, padding=1: W taps + channel mixing live in the banded weight
    #      (zero pad along W is implicit in the band); the H taps are two sublane
    #      rolls (XLU) with an iota row mask, so the whole conv is ONE
    #      (H, 3L) x (3L, L) matmul.  Patches slab assembled in bf16. ----
    row = jax.lax.broadcasted_iota(jnp.int32, (H, L), 0)
    h_up = jnp.where(row == 0, 0.0, pltpu.roll(h, shift=1, axis=0))         # h[r-1]
    h_dn = jnp.where(row == H - 1, 0.0, pltpu.roll(h, shift=H - 1, axis=0))  # h[r+1]
    patches = jnp.concatenate(
        [h_up.astype(bf16), h.astype(bf16), h_dn.astype(bf16)], axis=1)      # (H, 3L)
    h2 = bn_relu(mm(patches, w2_ref), consts_ref[2:3, :], consts_ref[3:4, :])

    # ---- conv1x1 #3 + bias + residual (residual x kept in f32) ----
    o_ref[...] = mm(h2.astype(bf16), w3_ref) + consts_ref[4:5, :] + x


def prepare_resblock_params(p, N, C, H, W):
    """One-time weight repack (layout plumbing). Build once, reuse across calls."""
    L = N * W * C
    f32 = jnp.float32
    eye_nw = jnp.eye(N * W, dtype=f32)
    w1b = jnp.kron(eye_nw, p["w1"].astype(f32)).astype(jnp.bfloat16)       # (L, L)
    w3b = jnp.kron(eye_nw, p["w3"].astype(f32)).astype(jnp.bfloat16)       # (L, L)
    w2 = p["w2"].astype(f32)                                               # (3,3,C,C) HWIO

    def banded(ky):  # fold kx taps (implicit zero pad along W) + channel mixing
        m = sum(jnp.kron(jnp.eye(W, k=-(kx - 1), dtype=f32), w2[ky, kx])
                for kx in range(3))                                        # (W*C, W*C)
        return jnp.kron(jnp.eye(N, dtype=f32), m)                          # (L, L)

    w2b = jnp.concatenate([banded(0), banded(1), banded(2)],
                          axis=0).astype(jnp.bfloat16)                     # (3L, L)

    tile_l = lambda v: jnp.tile(v.astype(f32), N * W)                      # (C,) -> (L,)
    # rows: [gamma1, beta1, gamma2, beta2, bias3]  (b1/b2 folded away by BN)
    consts = jnp.stack([tile_l(p["g1"]), tile_l(p["be1"]),
                        tile_l(p["g2"]), tile_l(p["be2"]),
                        tile_l(p["b3"])])                                  # (5, L)
    return {"w1b": w1b, "w2b": w2b, "w3b": w3b, "consts": consts}


@jax.jit
def resblock_forward(x_nchw, prepped):
    """ResBlock forward. x_nchw: (N, C, H, W) float32; returns (N, C, H, W)."""
    N, C, H, W = x_nchw.shape
    L = N * W * C
    assert L % 128 == 0, "lane-dense layout needs N*W*C to be a multiple of 128"
    assert L // C == N * W
    assert (N * W) & (N * W - 1) == 0, "lane all-reduce tree needs N*W power of two"
    f32 = jnp.float32

    # NCHW -> (H, N, W, C) -> (H, N*W*C): lane-dense activation slab
    x2d = jnp.transpose(x_nchw, (2, 0, 3, 1)).reshape(H, L).astype(f32)

    vmem = pl.BlockSpec(memory_space=pltpu.MemorySpace.VMEM)
    out2d = pl.pallas_call(
        functools.partial(_resblock_kernel, channels=C),
        out_shape=jax.ShapeDtypeStruct((H, L), f32),
        in_specs=[vmem] * 5,
        out_specs=vmem,
    )(x2d, prepped["w1b"], prepped["w2b"], prepped["w3b"], prepped["consts"])

    # (H, N*W*C) -> (H, N, W, C) -> NCHW
    return jnp.transpose(out2d.reshape(H, N, W, C), (1, 3, 0, 2))


# ----------------------- pure-JAX reference (for validation) -----------------------
def resblock_ref(x_nchw, p):
    x = jnp.transpose(x_nchw, (0, 2, 3, 1)).astype(jnp.float32)

    def bn_relu(h, g, b):
        mean = jnp.mean(h, axis=(0, 1, 2), keepdims=True)
        var = jnp.mean(jnp.square(h - mean), axis=(0, 1, 2), keepdims=True)
        return jnp.maximum((h - mean) * jax.lax.rsqrt(var + _EPS) * g + b, 0.0)

    def conv(h, w_hwio, b, pad):
        y = jax.lax.conv_general_dilated(
            h, w_hwio, window_strides=(1, 1), padding=pad,
            dimension_numbers=("NHWC", "HWIO", "NHWC"),
            precision=jax.lax.Precision.HIGHEST)
        return y + b

    h = bn_relu(conv(x, p["w1"][None, None], p["b1"], "VALID"), p["g1"], p["be1"])
    h = bn_relu(conv(h, p["w2"], p["b2"], ((1, 1), (1, 1))), p["g2"], p["be2"])
    h = conv(h, p["w3"][None, None], p["b3"], "VALID")
    return jnp.transpose(h + x, (0, 3, 1, 2))


if __name__ == "__main__":
    N, C, H, W = 2, 4, 16, 16
    key = jax.random.PRNGKey(0)
    ks = jax.random.split(key, 7)
    params = {
        # conv weights as (C_in, C_out) for 1x1, (3,3,C_in,C_out) HWIO for the 3x3
        "w1": jax.random.normal(ks[0], (C, C), jnp.float32) * 0.5,
        "b1": jax.random.normal(ks[1], (C,), jnp.float32) * 0.1,
        "w2": jax.random.normal(ks[2], (3, 3, C, C), jnp.float32) * 0.2,
        "b2": jax.random.normal(ks[3], (C,), jnp.float32) * 0.1,
        "w3": jax.random.normal(ks[4], (C, C), jnp.float32) * 0.5,
        "b3": jax.random.normal(ks[5], (C,), jnp.float32) * 0.1,
        # BatchNorm affine params: PyTorch defaults (gamma=1, beta=0)
        "g1": jnp.ones((C,), jnp.float32), "be1": jnp.zeros((C,), jnp.float32),
        "g2": jnp.ones((C,), jnp.float32), "be2": jnp.zeros((C,), jnp.float32),
    }
    x_nchw = jax.random.normal(ks[6], (N, C, H, W), jnp.float32)

    # One-time weight repack (hoisted out of the per-call path, per perf review).
    prepped = jax.tree_util.tree_map(jax.block_until_ready,
                                     prepare_resblock_params(params, N, C, H, W))

    out = jax.block_until_ready(resblock_forward(x_nchw, prepped))
    ref = jax.block_until_ready(resblock_ref(x_nchw, params))

    assert out.shape == (N, C, H, W) and out.dtype == jnp.float32
    max_err = float(jnp.max(jnp.abs(out - ref)))
    # kernel matmuls are single-pass bf16 on the MXU; the reference is f32/HIGHEST
    # -> compare at bf16-level tolerance.
    if not bool(jnp.allclose(out, ref, atol=3e-2, rtol=3e-2)):
        raise SystemExit(f"mismatch vs reference: max abs err = {max_err}")
    print("KERNEL_OK")
</pallas_src>

<mosaic_0001>
module attributes {stable_mosaic.version = 11 : i64} {
  func.func @_resblock_kernel(%arg0: memref<16x128xf32, #tpu.memory_space<vmem>>, %arg1: memref<128x128xbf16, #tpu.memory_space<vmem>>, %arg2: memref<384x128xbf16, #tpu.memory_space<vmem>>, %arg3: memref<128x128xbf16, #tpu.memory_space<vmem>>, %arg4: memref<5x128xf32, #tpu.memory_space<vmem>>, %arg5: memref<16x128xf32, #tpu.memory_space<vmem>>) attributes {dimension_semantics = [], scalar_prefetch = 0 : i64, scratch_operands = 0 : i64, tpu.core_type = #tpu.core_type<tc>} {
    %c0 = arith.constant 0 : index
    %c0_0 = arith.constant 0 : index
    %0 = vector.load %arg0[%c0, %c0_0] : memref<16x128xf32, #tpu.memory_space<vmem>>, vector<16x128xf32>
    %1 = arith.truncf %0 : vector<16x128xf32> to vector<16x128xbf16>
    %c0_1 = arith.constant 0 : index
    %c0_2 = arith.constant 0 : index
    %2 = vector.load %arg1[%c0_1, %c0_2] : memref<128x128xbf16, #tpu.memory_space<vmem>>, vector<128x128xbf16>
    %cst = arith.constant dense<0.000000e+00> : vector<16x128xf32>
    %3 = tpu.matmul %1, %2, %cst {dimension_numbers = #tpu.dot_dimension_numbers<[1], [0], [0], [1], [0, 0, 1, 1], [], []>} : vector<16x128xbf16>, vector<128x128xbf16>, vector<16x128xf32> -> vector<16x128xf32>
    %c0_3 = arith.constant 0 : index
    %c0_4 = arith.constant 0 : index
    %4 = vector.load %arg4[%c0_3, %c0_4] : memref<5x128xf32, #tpu.memory_space<vmem>>, vector<1x128xf32>
    %c1 = arith.constant 1 : index
    %c0_5 = arith.constant 0 : index
    %5 = vector.load %arg4[%c1, %c0_5] : memref<5x128xf32, #tpu.memory_space<vmem>>, vector<1x128xf32>
    %cst_6 = arith.constant dense<0.000000e+00> : vector<128xf32>
    %6 = vector.multi_reduction <add>, %3, %cst_6 [0] : vector<16x128xf32> to vector<128xf32>
    %7 = vector.shape_cast %6 : vector<128xf32> to vector<1x128xf32>
    %8 = arith.mulf %3, %3 : vector<16x128xf32>
    %cst_7 = arith.constant dense<0.000000e+00> : vector<128xf32>
    %9 = vector.multi_reduction <add>, %8, %cst_7 [0] : vector<16x128xf32> to vector<128xf32>
    %10 = vector.shape_cast %9 : vector<128xf32> to vector<1x128xf32>
    %11 = tpu.concatenate %7, %10 in 0 : vector<1x128xf32>, vector<1x128xf32> -> vector<2x128xf32>
    %c4_i32 = arith.constant 4 : i32
    %12 = tpu.dynamic_rotate %11 by %c4_i32 dim 1 : vector<2x128xf32>, i32 -> vector<2x128xf32>
    %13 = arith.addf %11, %12 : vector<2x128xf32>
    %c8_i32 = arith.constant 8 : i32
    %14 = tpu.dynamic_rotate %13 by %c8_i32 dim 1 : vector<2x128xf32>, i32 -> vector<2x128xf32>
    %15 = arith.addf %13, %14 : vector<2x128xf32>
    %c16_i32 = arith.constant 16 : i32
    %16 = tpu.dynamic_rotate %15 by %c16_i32 dim 1 : vector<2x128xf32>, i32 -> vector<2x128xf32>
    %17 = arith.addf %15, %16 : vector<2x128xf32>
    %c32_i32 = arith.constant 32 : i32
    %18 = tpu.dynamic_rotate %17 by %c32_i32 dim 1 : vector<2x128xf32>, i32 -> vector<2x128xf32>
    %19 = arith.addf %17, %18 : vector<2x128xf32>
    %c64_i32 = arith.constant 64 : i32
    %20 = tpu.dynamic_rotate %19 by %c64_i32 dim 1 : vector<2x128xf32>, i32 -> vector<2x128xf32>
    %21 = arith.addf %19, %20 : vector<2x128xf32>
    %22 = vector.extract_strided_slice %21 {offsets = [0, 0], sizes = [1, 128], strides = [1, 1]} : vector<2x128xf32> to vector<1x128xf32>
    %cst_8 = arith.constant 0.001953125 : f32
    %23 = vector.broadcast %cst_8 : f32 to vector<1x128xf32>
    %24 = arith.mulf %22, %23 : vector<1x128xf32>
    %25 = vector.extract_strided_slice %21 {offsets = [1, 0], sizes = [1, 128], strides = [1, 1]} : vector<2x128xf32> to vector<1x128xf32>
    %cst_9 = arith.constant 0.001953125 : f32
    %26 = vector.broadcast %cst_9 : f32 to vector<1x128xf32>
    %27 = arith.mulf %25, %26 : vector<1x128xf32>
    %28 = arith.mulf %24, %24 : vector<1x128xf32>
    %29 = arith.subf %27, %28 : vector<1x128xf32>
    %cst_10 = arith.constant 9.99999974E-6 : f32
    %30 = vector.broadcast %cst_10 : f32 to vector<1x128xf32>
    %31 = arith.addf %29, %30 : vector<1x128xf32>
    %32 = math.rsqrt %31 : vector<1x128xf32>
    %33 = arith.mulf %4, %32 : vector<1x128xf32>
    %34 = arith.mulf %24, %33 : vector<1x128xf32>
    %35 = arith.subf %5, %34 : vector<1x128xf32>
    %36 = vector.broadcast %33 : vector<1x128xf32> to vector<16x128xf32>
    %37 = arith.mulf %3, %36 : vector<16x128xf32>
    %38 = vector.broadcast %35 : vector<1x128xf32> to vector<16x128xf32>
    %39 = arith.addf %37, %38 : vector<16x128xf32>
    %cst_11 = arith.constant 0.000000e+00 : f32
    %40 = vector.broadcast %cst_11 : f32 to vector<16x128xf32>
    %41 = arith.maximumf %39, %40 : vector<16x128xf32>
    %42 = tpu.iota {dimensions = array<i32: 0>} : vector<16x128xi32>
    %c0_i32 = arith.constant 0 : i32
    %43 = vector.broadcast %c0_i32 : i32 to vector<16x128xi32>
    %44 = arith.cmpi eq, %42, %43 : vector<16x128xi32>
    %c1_i32 = arith.constant 1 : i32
    %45 = tpu.dynamic_rotate %41 by %c1_i32 dim 0 : vector<16x128xf32>, i32 -> vector<16x128xf32>
    %cst_12 = arith.constant 0.000000e+00 : f32
    %46 = vector.broadcast %cst_12 : f32 to vector<16x128xf32>
    %47 = arith.select %44, %46, %45 : vector<16x128xi1>, vector<16x128xf32>
    %c15_i32 = arith.constant 15 : i32
    %48 = vector.broadcast %c15_i32 : i32 to vector<16x128xi32>
    %49 = arith.cmpi eq, %42, %48 : vector<16x128xi32>
    %c15_i32_13 = arith.constant 15 : i32
    %50 = tpu.dynamic_rotate %41 by %c15_i32_13 dim 0 : vector<16x128xf32>, i32 -> vector<16x128xf32>
    %cst_14 = arith.constant 0.000000e+00 : f32
    %51 = vector.broadcast %cst_14 : f32 to vector<16x128xf32>
    %52 = arith.select %49, %51, %50 : vector<16x128xi1>, vector<16x128xf32>
    %53 = arith.truncf %47 : vector<16x128xf32> to vector<16x128xbf16>
    %54 = arith.truncf %41 : vector<16x128xf32> to vector<16x128xbf16>
    %55 = arith.truncf %52 : vector<16x128xf32> to vector<16x128xbf16>
    %56 = tpu.concatenate %53, %54, %55 in 1 : vector<16x128xbf16>, vector<16x128xbf16>, vector<16x128xbf16> -> vector<16x384xbf16>
    %c0_15 = arith.constant 0 : index
    %c0_16 = arith.constant 0 : index
    %57 = vector.load %arg2[%c0_15, %c0_16] : memref<384x128xbf16, #tpu.memory_space<vmem>>, vector<384x128xbf16>
    %cst_17 = arith.constant dense<0.000000e+00> : vector<16x128xf32>
    %58 = tpu.matmul %56, %57, %cst_17 {dimension_numbers = #tpu.dot_dimension_numbers<[1], [0], [0], [1], [0, 0, 1, 1], [], []>} : vector<16x384xbf16>, vector<384x128xbf16>, vector<16x128xf32> -> vector<16x128xf32>
    %c2 = arith.constant 2 : index
    %c0_18 = arith.constant 0 : index
    %59 = vector.load %arg4[%c2, %c0_18] : memref<5x128xf32, #tpu.memory_space<vmem>>, vector<1x128xf32>
    %c3 = arith.constant 3 : index
    %c0_19 = arith.constant 0 : index
    %60 = vector.load %arg4[%c3, %c0_19] : memref<5x128xf32, #tpu.memory_space<vmem>>, vector<1x128xf32>
    %cst_20 = arith.constant dense<0.000000e+00> : vector<128xf32>
    %61 = vector.multi_reduction <add>, %58, %cst_20 [0] : vector<16x128xf32> to vector<128xf32>
    %62 = vector.shape_cast %61 : vector<128xf32> to vector<1x128xf32>
    %63 = arith.mulf %58, %58 : vector<16x128xf32>
    %cst_21 = arith.constant dense<0.000000e+00> : vector<128xf32>
    %64 = vector.multi_reduction <add>, %63, %cst_21 [0] : vector<16x128xf32> to vector<128xf32>
    %65 = vector.shape_cast %64 : vector<128xf32> to vector<1x128xf32>
    %66 = tpu.concatenate %62, %65 in 0 : vector<1x128xf32>, vector<1x128xf32> -> vector<2x128xf32>
    %c4_i32_22 = arith.constant 4 : i32
    %67 = tpu.dynamic_rotate %66 by %c4_i32_22 dim 1 : vector<2x128xf32>, i32 -> vector<2x128xf32>
    %68 = arith.addf %66, %67 : vector<2x128xf32>
    %c8_i32_23 = arith.constant 8 : i32
    %69 = tpu.dynamic_rotate %68 by %c8_i32_23 dim 1 : vector<2x128xf32>, i32 -> vector<2x128xf32>
    %70 = arith.addf %68, %69 : vector<2x128xf32>
    %c16_i32_24 = arith.constant 16 : i32
    %71 = tpu.dynamic_rotate %70 by %c16_i32_24 dim 1 : vector<2x128xf32>, i32 -> vector<2x128xf32>
    %72 = arith.addf %70, %71 : vector<2x128xf32>
    %c32_i32_25 = arith.constant 32 : i32
    %73 = tpu.dynamic_rotate %72 by %c32_i32_25 dim 1 : vector<2x128xf32>, i32 -> vector<2x128xf32>
    %74 = arith.addf %72, %73 : vector<2x128xf32>
    %c64_i32_26 = arith.constant 64 : i32
    %75 = tpu.dynamic_rotate %74 by %c64_i32_26 dim 1 : vector<2x128xf32>, i32 -> vector<2x128xf32>
    %76 = arith.addf %74, %75 : vector<2x128xf32>
    %77 = vector.extract_strided_slice %76 {offsets = [0, 0], sizes = [1, 128], strides = [1, 1]} : vector<2x128xf32> to vector<1x128xf32>
    %cst_27 = arith.constant 0.001953125 : f32
    %78 = vector.broadcast %cst_27 : f32 to vector<1x128xf32>
    %79 = arith.mulf %77, %78 : vector<1x128xf32>
    %80 = vector.extract_strided_slice %76 {offsets = [1, 0], sizes = [1, 128], strides = [1, 1]} : vector<2x128xf32> to vector<1x128xf32>
    %cst_28 = arith.constant 0.001953125 : f32
    %81 = vector.broadcast %cst_28 : f32 to vector<1x128xf32>
    %82 = arith.mulf %80, %81 : vector<1x128xf32>
    %83 = arith.mulf %79, %79 : vector<1x128xf32>
    %84 = arith.subf %82, %83 : vector<1x128xf32>
    %cst_29 = arith.constant 9.99999974E-6 : f32
    %85 = vector.broadcast %cst_29 : f32 to vector<1x128xf32>
    %86 = arith.addf %84, %85 : vector<1x128xf32>
    %87 = math.rsqrt %86 : vector<1x128xf32>
    %88 = arith.mulf %59, %87 : vector<1x128xf32>
    %89 = arith.mulf %79, %88 : vector<1x128xf32>
    %90 = arith.subf %60, %89 : vector<1x128xf32>
    %91 = vector.broadcast %88 : vector<1x128xf32> to vector<16x128xf32>
    %92 = arith.mulf %58, %91 : vector<16x128xf32>
    %93 = vector.broadcast %90 : vector<1x128xf32> to vector<16x128xf32>
    %94 = arith.addf %92, %93 : vector<16x128xf32>
    %cst_30 = arith.constant 0.000000e+00 : f32
    %95 = vector.broadcast %cst_30 : f32 to vector<16x128xf32>
    %96 = arith.maximumf %94, %95 : vector<16x128xf32>
    %97 = arith.truncf %96 : vector<16x128xf32> to vector<16x128xbf16>
    %c0_31 = arith.constant 0 : index
    %c0_32 = arith.constant 0 : index
    %98 = vector.load %arg3[%c0_31, %c0_32] : memref<128x128xbf16, #tpu.memory_space<vmem>>, vector<128x128xbf16>
    %cst_33 = arith.constant dense<0.000000e+00> : vector<16x128xf32>
    %99 = tpu.matmul %97, %98, %cst_33 {dimension_numbers = #tpu.dot_dimension_numbers<[1], [0], [0], [1], [0, 0, 1, 1], [], []>} : vector<16x128xbf16>, vector<128x128xbf16>, vector<16x128xf32> -> vector<16x128xf32>
    %c4 = arith.constant 4 : index
    %c0_34 = arith.constant 0 : index
    %100 = vector.load %arg4[%c4, %c0_34] : memref<5x128xf32, #tpu.memory_space<vmem>>, vector<1x128xf32>
    %101 = vector.broadcast %100 : vector<1x128xf32> to vector<16x128xf32>
    %102 = arith.addf %99, %101 : vector<16x128xf32>
    %103 = arith.addf %102, %0 : vector<16x128xf32>
    %c0_35 = arith.constant 0 : index
    %c0_36 = arith.constant 0 : index
    %104 = vector.load %arg5[%c0_35, %c0_36] : memref<16x128xf32, #tpu.memory_space<vmem>>, vector<16x128xf32>
    tpu.vector_store %arg5[%c0_35, %c0_36], %103 {strides = array<i32>} : memref<16x128xf32, #tpu.memory_space<vmem>>, vector<16x128xf32>,
    return
  }
}

</mosaic_0001>

<llo_original>
// kernel: resblock_forward.1
$region0: #{resblock_forward.1}
  #allocation0 [shape = 'u32[]', space=smem, size = 0x4, offset = 0x4, fixed_abs, tag = 'smem constant byte address 0x4 - core index']
  #allocation1 [shape = 'u32[144,128]{1,0:T(1,128)}', space=vmem, size = 0x12000, scoped, tag = 'internal scratch']
  %s0 = inlined_call_operand.vmem [shape: f32[16,128], index: 0, kind: input, shape index: {}]
  %s1 = inlined_call_operand.vmem [shape: bf16[128,128], index: 1, kind: input, shape index: {}]
  %s2 = inlined_call_operand.vmem [shape: bf16[384,128], index: 2, kind: input, shape index: {}]
  %s3 = inlined_call_operand.vmem [shape: bf16[128,128], index: 3, kind: input, shape index: {}]
  %s4 = inlined_call_operand.vmem [shape: f32[5,128], index: 4, kind: input, shape index: {}]
  %s5 = inlined_call_operand.vmem [shape: f32[16,128], index: 5, kind: output, shape index: {}]
  %s6 = sld [smem:[#allocation0]]
  $region30: #{resblock_forward.1} parent=0
    _
  %s8 = ssub.s32 1, %s6
  %s9 = scalar_select 0, %s8, %s6
  // Predicated region
  $region2: #{resblock_forward.1} parent=0 // pred_check
    _
  $region3: #{resblock_forward.1} parent=0 // pred_check_branch
    %11 = sbr.rel (0) target = $region5
  $region4: #{resblock_forward.1} parent=0 // pred_region
    _
  $region5: #{resblock_forward.1} parent=0 // pred_fallthru
    _
  // Predicated region
  $region6: #{resblock_forward.1} parent=0 // pred_check
    _
  $region7: #{resblock_forward.1} parent=0 // pred_check_branch
    %13 = sbr.rel (0) target = $region9
  $region8: #{resblock_forward.1} parent=0 // pred_region
    _
  $region9: #{resblock_forward.1} parent=0 // pred_fallthru
    _
  // Predicated region
  $region10: #{resblock_forward.1} parent=0 // pred_check
    _
  $region11: #{resblock_forward.1} parent=0 // pred_check_branch
    %15 = sbr.rel (0) target = $region13
  $region12: #{resblock_forward.1} parent=0 // pred_region
    _
  $region13: #{resblock_forward.1} parent=0 // pred_fallthru
    _
  // Predicated region
  $region14: #{resblock_forward.1} parent=0 // pred_check
    _
  $region15: #{resblock_forward.1} parent=0 // pred_check_branch
    %17 = sbr.rel (0) target = $region17
  $region16: #{resblock_forward.1} parent=0 // pred_region
    _
  $region17: #{resblock_forward.1} parent=0 // pred_fallthru
    _
  // Predicated region
  $region18: #{resblock_forward.1} parent=0 // pred_check
    _
  $region19: #{resblock_forward.1} parent=0 // pred_check_branch
    %19 = sbr.rel (0) target = $region21
  $region20: #{resblock_forward.1} parent=0 // pred_region
    _
  $region21: #{resblock_forward.1} parent=0 // pred_fallthru
    _
  %v21 = vld [vmem:[%s0] sm:$0xff]
  %v22 = vld [vmem:[%s0 + $0x8] sm:$0xff]
  %v23 = vpack.c.bf16 %v22, %v21
  %v24 = vld [vmem:[%s1] sm:$0xf]
  %v25 = vld [vmem:[%s1 + $0x4] sm:$0xf]
  %v26 = vld [vmem:[%s1 + $0x8] sm:$0xf]
  %v27 = vld [vmem:[%s1 + $0xc] sm:$0xf]
  %v28 = vld [vmem:[%s1 + $0x10] sm:$0xf]
  %v29 = vld [vmem:[%s1 + $0x14] sm:$0xf]
  %v30 = vld [vmem:[%s1 + $0x18] sm:$0xf]
  %v31 = vld [vmem:[%s1 + $0x1c] sm:$0xf]
  %v32 = vld [vmem:[%s1 + $0x20] sm:$0xf]
  %v33 = vld [vmem:[%s1 + $0x24] sm:$0xf]
  %v34 = vld [vmem:[%s1 + $0x28] sm:$0xf]
  %v35 = vld [vmem:[%s1 + $0x2c] sm:$0xf]
  %v36 = vld [vmem:[%s1 + $0x30] sm:$0xf]
  %v37 = vld [vmem:[%s1 + $0x34] sm:$0xf]
  %v38 = vld [vmem:[%s1 + $0x38] sm:$0xf]
  %v39 = vld [vmem:[%s1 + $0x3c] sm:$0xf]
  %v56 = vunpack.c.l.b16 %v24
  %v57 = vunpack.c.l.b16 %v25
  %v58 = vunpack.c.l.b16 %v26
  %v59 = vunpack.c.l.b16 %v27
  %v60 = vunpack.c.l.b16 %v28
  %v61 = vunpack.c.l.b16 %v29
  %v62 = vunpack.c.l.b16 %v30
  %v63 = vunpack.c.l.b16 %v31
  %v64 = vunpack.c.l.b16 %v32
  %v65 = vunpack.c.l.b16 %v33
  %v66 = vunpack.c.l.b16 %v34
  %v67 = vunpack.c.l.b16 %v35
  %v68 = vunpack.c.l.b16 %v36
  %v69 = vunpack.c.l.b16 %v37
  %v70 = vunpack.c.l.b16 %v38
  %v71 = vunpack.c.l.b16 %v39
  %v72 = vpack.c.b16 %v57, %v56
  %v73 = vpack.c.b16 %v59, %v58
  %v74 = vpack.c.b16 %v61, %v60
  %v75 = vpack.c.b16 %v63, %v62
  %v76 = vpack.c.b16 %v65, %v64
  %v77 = vpack.c.b16 %v67, %v66
  %v78 = vpack.c.b16 %v69, %v68
  %v79 = vpack.c.b16 %v71, %v70
  %88 = vmatprep.subr.bf16.mxu0 0
  %89 = vmatpush1.bf16.msra.mxu0 %v72
  %90 = vmatprep.subr.bf16.mxu0 0
  %91 = vmatpush1.bf16.msra.mxu0 %v73
  %92 = vmatprep.subr.bf16.mxu0 0
  %93 = vmatpush1.bf16.msra.mxu0 %v74
  %94 = vmatprep.subr.bf16.mxu0 0
  %95 = vmatpush1.bf16.msra.mxu0 %v75
  %96 = vmatprep.subr.bf16.mxu0 0
  %97 = vmatpush1.bf16.msra.mxu0 %v76
  %98 = vmatprep.subr.bf16.mxu0 0
  %99 = vmatpush1.bf16.msra.mxu0 %v77
  %100 = vmatprep.subr.bf16.mxu0 0
  %101 = vmatpush1.bf16.msra.mxu0 %v78
  %102 = vmatprep.subr.bf16.mxu0 0
  %103 = vmatpush1.bf16.msra.mxu0 %v79
  %104 = vmatprep.subr.bf16.mxu0 0
  %105 = vmatpush1.bf16.msra.mxu0 0
  %106 = vmatprep.subr.bf16.mxu0 0
  %107 = vmatpush1.bf16.msra.mxu0 0
  %108 = vmatprep.subr.bf16.mxu0 0
  %109 = vmatpush1.bf16.msra.mxu0 0
  %110 = vmatprep.subr.bf16.mxu0 0
  %111 = vmatpush1.bf16.msra.mxu0 0
  %112 = vmatprep.subr.bf16.mxu0 0
  %113 = vmatpush1.bf16.msra.mxu0 0
  %114 = vmatprep.subr.bf16.mxu0 0
  %115 = vmatpush1.bf16.msra.mxu0 0
  %116 = vmatprep.subr.bf16.mxu0 0
  %117 = vmatpush1.bf16.msra.mxu0 0
  %118 = vmatprep.subr.bf16.mxu0 0
  %119 = vmatpush1.bf16.msra.mxu0 0
  %120 = vmatprep.mubr.bf16.mxu0 0
  %121 = vmatmul.mubr.bf16.gmra.mrb[0].mxu0 %v23
  %v122 = vpop.f32.mrb[0].mxu0
  %v123 = vadd.f32 0.0, %v122
  %v124 = vpop.f32.mrb[0].mxu0
  %v125 = vpop.f32.mrb[0].mxu0
  %v126 = vadd.f32 0.0, %v125
  %v127 = vpop.f32.mrb[0].mxu0
  %128 = vdwg.mxu0
  %v129 = vld [vmem:[%s4] sm:$0x1]
  %v130 = vld [vmem:[%s4 + $0x1] sm:$0x1]
  %v131 = vadd.f32 %v123, %v126
  %v132 = vrot.slane %v131, 4
  %v133 = vadd.f32 %v131, %v132
  %v134 = vrot.slane %v133, 2
  %v135 = vadd.f32 %v133, %v134
  %v136 = vrot.slane %v135, 1
  %v137 = vadd.f32 %v135, %v136
  %v138 = vmul.f32 %v123, %v123
  %v139 = vmul.f32 %v126, %v126
  %v140 = vadd.f32 %v138, %v139
  %v141 = vrot.slane %v140, 4
  %v142 = vadd.f32 %v140, %v141
  %v143 = vrot.slane %v142, 2
  %v144 = vadd.f32 %v142, %v143
  %v145 = vrot.slane %v144, 1
  %v146 = vadd.f32 %v144, %v145
  %vm147 = vcmask 1040384
  %v148 = vsel %vm147, %v137, %v146
  %149 = vrot.lane.b32.xlu0 %v148, 4
  %v150 = vpop.permute.xlu0 %149
  %v151 = vadd.f32 %v148, %v150
  %152 = vrot.lane.b32.xlu0 %v151, 8
  %v153 = vpop.permute.xlu0 %152
  %v154 = vadd.f32 %v151, %v153
  %155 = vrot.lane.b32.xlu0 %v154, 16
  %v156 = vpop.permute.xlu0 %155
  %v157 = vadd.f32 %v154, %v156
  %158 = vrot.lane.b32.xlu0 %v157, 32
  %v159 = vpop.permute.xlu0 %158
  %v160 = vadd.f32 %v157, %v159
  %161 = vrot.lane.b32.xlu0 %v160, 64
  %v162 = vpop.permute.xlu0 %161
  %v163 = vadd.f32 %v160, %v162
  %v164 = vmul.f32 %v163, 0.001953125
  %v165 = vmul.f32 %v164, %v164
  %v167 = vrot.slane %v165, 7
  %v169 = vsub.f32 %v164, %v167
  %v170 = vadd.f32 %v169, 1e-05
  %v171 = vrsqrt.pop %v170
  %v173 = vrot.slane %v171, 1
  %v175 = vmul.f32 %v129, %v173
  %v176 = vmul.f32 %v164, %v175
  %v177 = vsub.f32 %v130, %v176
  %v178 = vlaneseq
  %v179 = vshrl.u32 %v178, 7
  %v180 = vsub.s32 0, %v179
  %v181 = vrot.slane %v175, %v180
  %v182 = vmul.f32 %v123, %v181
  %v183 = vmul.f32 %v126, %v181
  %v184 = vlaneseq
  %v185 = vshrl.u32 %v184, 7
  %v186 = vsub.s32 0, %v185
  %v187 = vrot.slane %v177, %v186
  %v188 = vadd.f32 %v182, %v187
  %v189 = vadd.f32 %v183, %v187
  %v190 = vmax.f32 %v188, 0.0
  %v191 = vmax.f32 %v189, 0.0
  %v192 = vlaneseq
  %v193 = vshrl.u32 %v192, 7
  %v194 = vadd.s32 %v193, 8
  %vm195 = vcmp.eq.s32.totalorder %v193, 0
  %vm196 = vcmp.eq.s32.totalorder %v194, 0
  %v197 = vrot.slane %v190, 7
  %v198 = vrot.slane %v191, 7
  %vm199 = vcmp.lt.s32.totalorder %v193, 1
  %v200 = vsel %vm199, %v197, %v198
  %v201 = vsel %vm199, %v198, %v197
  %v202 = vsel %vm195, 0.0, %v201
  %v203 = vsel %vm196, 0.0, %v200
  %vm204 = vcmp.eq.s32.totalorder %v193, 15
  %vm205 = vcmp.eq.s32.totalorder %v194, 15
  %v206 = vrot.slane %v190, 1
  %v207 = vrot.slane %v191, 1
  %vm208 = vcmp.lt.s32.totalorder %v193, 7
  %v209 = vsel %vm208, %v206, %v207
  %v210 = vsel %vm208, %v207, %v206
  %v211 = vsel %vm204, 0.0, %v209
  %v212 = vsel %vm205, 0.0, %v210
  %v213 = vpack.c.bf16 %v203, %v202
  %v214 = vpack.c.bf16 %v191, %v190
  %v215 = vpack.c.bf16 %v212, %v211
  %v216 = vld [vmem:[%s2] sm:$0xf]
  %v217 = vld [vmem:[%s2 + $0x4] sm:$0xf]
  %v218 = vld [vmem:[%s2 + $0x8] sm:$0xf]
  %v219 = vld [vmem:[%s2 + $0xc] sm:$0xf]
  %v220 = vld [vmem:[%s2 + $0x10] sm:$0xf]
  %v221 = vld [vmem:[%s2 + $0x14] sm:$0xf]
  %v222 = vld [vmem:[%s2 + $0x18] sm:$0xf]
  %v223 = vld [vmem:[%s2 + $0x1c] sm:$0xf]
  %v224 = vld [vmem:[%s2 + $0x20] sm:$0xf]
  %v225 = vld [vmem:[%s2 + $0x24] sm:$0xf]
  %v226 = vld [vmem:[%s2 + $0x28] sm:$0xf]
  %v227 = vld [vmem:[%s2 + $0x2c] sm:$0xf]
  %v228 = vld [vmem:[%s2 + $0x30] sm:$0xf]
  %v229 = vld [vmem:[%s2 + $0x34] sm:$0xf]
  %v230 = vld [vmem:[%s2 + $0x38] sm:$0xf]
  %v231 = vld [vmem:[%s2 + $0x3c] sm:$0xf]
  %v232 = vld [vmem:[%s2 + $0x40] sm:$0xf]
  %v233 = vld [vmem:[%s2 + $0x44] sm:$0xf]
  %v234 = vld [vmem:[%s2 + $0x48] sm:$0xf]
  %v235 = vld [vmem:[%s2 + $0x4c] sm:$0xf]
  %v236 = vld [vmem:[%s2 + $0x50] sm:$0xf]
  %v237 = vld [vmem:[%s2 + $0x54] sm:$0xf]
  %v238 = vld [vmem:[%s2 + $0x58] sm:$0xf]
  %v239 = vld [vmem:[%s2 + $0x5c] sm:$0xf]
  %v240 = vld [vmem:[%s2 + $0x60] sm:$0xf]
  %v241 = vld [vmem:[%s2 + $0x64] sm:$0xf]
  %v242 = vld [vmem:[%s2 + $0x68] sm:$0xf]
  %v243 = vld [vmem:[%s2 + $0x6c] sm:$0xf]
  %v244 = vld [vmem:[%s2 + $0x70] sm:$0xf]
  %v245 = vld [vmem:[%s2 + $0x74] sm:$0xf]
  %v246 = vld [vmem:[%s2 + $0x78] sm:$0xf]
  %v247 = vld [vmem:[%s2 + $0x7c] sm:$0xf]
  %v248 = vld [vmem:[%s2 + $0x80] sm:$0xf]
  %v249 = vld [vmem:[%s2 + $0x84] sm:$0xf]
  %v250 = vld [vmem:[%s2 + $0x88] sm:$0xf]
  %v251 = vld [vmem:[%s2 + $0x8c] sm:$0xf]
  %v252 = vld [vmem:[%s2 + $0x90] sm:$0xf]
  %v253 = vld [vmem:[%s2 + $0x94] sm:$0xf]
  %v254 = vld [vmem:[%s2 + $0x98] sm:$0xf]
  %v255 = vld [vmem:[%s2 + $0x9c] sm:$0xf]
  %v256 = vld [vmem:[%s2 + $0xa0] sm:$0xf]
  %v257 = vld [vmem:[%s2 + $0xa4] sm:$0xf]
  %v258 = vld [vmem:[%s2 + $0xa8] sm:$0xf]
  %v259 = vld [vmem:[%s2 + $0xac] sm:$0xf]
  %v260 = vld [vmem:[%s2 + $0xb0] sm:$0xf]
  %v261 = vld [vmem:[%s2 + $0xb4] sm:$0xf]
  %v262 = vld [vmem:[%s2 + $0xb8] sm:$0xf]
  %v263 = vld [vmem:[%s2 + $0xbc] sm:$0xf]
  %v312 = vunpack.c.l.b16 %v216
  %v313 = vunpack.c.l.b16 %v217
  %v314 = vunpack.c.l.b16 %v218
  %v315 = vunpack.c.l.b16 %v219
  %v316 = vunpack.c.l.b16 %v220
  %v317 = vunpack.c.l.b16 %v221
  %v318 = vunpack.c.l.b16 %v222
  %v319 = vunpack.c.l.b16 %v223
  %v320 = vunpack.c.l.b16 %v224
  %v321 = vunpack.c.l.b16 %v225
  %v322 = vunpack.c.l.b16 %v226
  %v323 = vunpack.c.l.b16 %v227
  %v324 = vunpack.c.l.b16 %v228
  %v325 = vunpack.c.l.b16 %v229
  %v326 = vunpack.c.l.b16 %v230
  %v327 = vunpack.c.l.b16 %v231
  %v328 = vunpack.c.l.b16 %v232
  %v329 = vunpack.c.l.b16 %v233
  %v330 = vunpack.c.l.b16 %v234
  %v331 = vunpack.c.l.b16 %v235
  %v332 = vunpack.c.l.b16 %v236
  %v333 = vunpack.c.l.b16 %v237
  %v334 = vunpack.c.l.b16 %v238
  %v335 = vunpack.c.l.b16 %v239
  %v336 = vunpack.c.l.b16 %v240
  %v337 = vunpack.c.l.b16 %v241
  %v338 = vunpack.c.l.b16 %v242
  %v339 = vunpack.c.l.b16 %v243
  %v340 = vunpack.c.l.b16 %v244
  %v341 = vunpack.c.l.b16 %v245
  %v342 = vunpack.c.l.b16 %v246
  %v343 = vunpack.c.l.b16 %v247
  %v344 = vunpack.c.l.b16 %v248
  %v345 = vunpack.c.l.b16 %v249
  %v346 = vunpack.c.l.b16 %v250
  %v347 = vunpack.c.l.b16 %v251
  %v348 = vunpack.c.l.b16 %v252
  %v349 = vunpack.c.l.b16 %v253
  %v350 = vunpack.c.l.b16 %v254
  %v351 = vunpack.c.l.b16 %v255
  %v352 = vunpack.c.l.b16 %v256
  %v353 = vunpack.c.l.b16 %v257
  %v354 = vunpack.c.l.b16 %v258
  %v355 = vunpack.c.l.b16 %v259
  %v356 = vunpack.c.l.b16 %v260
  %v357 = vunpack.c.l.b16 %v261
  %v358 = vunpack.c.l.b16 %v262
  %v359 = vunpack.c.l.b16 %v263
  %v360 = vpack.c.b16 %v313, %v312
  %v361 = vpack.c.b16 %v315, %v314
  %v362 = vpack.c.b16 %v317, %v316
  %v363 = vpack.c.b16 %v319, %v318
  %v364 = vpack.c.b16 %v321, %v320
  %v365 = vpack.c.b16 %v323, %v322
  %v366 = vpack.c.b16 %v325, %v324
  %v367 = vpack.c.b16 %v327, %v326
  %v368 = vpack.c.b16 %v329, %v328
  %v369 = vpack.c.b16 %v331, %v330
  %v370 = vpack.c.b16 %v333, %v332
  %v371 = vpack.c.b16 %v335, %v334
  %v372 = vpack.c.b16 %v337, %v336
  %v373 = vpack.c.b16 %v339, %v338
  %v374 = vpack.c.b16 %v341, %v340
  %v375 = vpack.c.b16 %v343, %v342
  %v376 = vpack.c.b16 %v345, %v344
  %v377 = vpack.c.b16 %v347, %v346
  %v378 = vpack.c.b16 %v349, %v348
  %v379 = vpack.c.b16 %v351, %v350
  %v380 = vpack.c.b16 %v353, %v352
  %v381 = vpack.c.b16 %v355, %v354
  %v382 = vpack.c.b16 %v357, %v356
  %v383 = vpack.c.b16 %v359, %v358
  %408 = vmatprep.subr.bf16.mxu0 0
  %409 = vmatpush1.bf16.msra.mxu0 %v360
  %410 = vmatprep.subr.bf16.mxu0 0
  %411 = vmatpush1.bf16.msra.mxu0 %v361
  %412 = vmatprep.subr.bf16.mxu0 0
  %413 = vmatpush1.bf16.msra.mxu0 %v362
  %414 = vmatprep.subr.bf16.mxu0 0
  %415 = vmatpush1.bf16.msra.mxu0 %v363
  %416 = vmatprep.subr.bf16.mxu0 0
  %417 = vmatpush1.bf16.msra.mxu0 %v364
  %418 = vmatprep.subr.bf16.mxu0 0
  %419 = vmatpush1.bf16.msra.mxu0 %v365
  %420 = vmatprep.subr.bf16.mxu0 0
  %421 = vmatpush1.bf16.msra.mxu0 %v366
  %422 = vmatprep.subr.bf16.mxu0 0
  %423 = vmatpush1.bf16.msra.mxu0 %v367
  %424 = vmatprep.subr.bf16.mxu0 0
  %425 = vmatpush1.bf16.msra.mxu0 %v368
  %426 = vmatprep.subr.bf16.mxu0 0
  %427 = vmatpush1.bf16.msra.mxu0 %v369
  %428 = vmatprep.subr.bf16.mxu0 0
  %429 = vmatpush1.bf16.msra.mxu0 %v370
  %430 = vmatprep.subr.bf16.mxu0 0
  %431 = vmatpush1.bf16.msra.mxu0 %v371
  %432 = vmatprep.subr.bf16.mxu0 0
  %433 = vmatpush1.bf16.msra.mxu0 %v372
  %434 = vmatprep.subr.bf16.mxu0 0
  %435 = vmatpush1.bf16.msra.mxu0 %v373
  %436 = vmatprep.subr.bf16.mxu0 0
  %437 = vmatpush1.bf16.msra.mxu0 %v374
  %438 = vmatprep.subr.bf16.mxu0 0
  %439 = vmatpush1.bf16.msra.mxu0 %v375
  %440 = vmatprep.mubr.bf16.mxu0 %v214
  %441 = vmatmul.mubr.bf16.gmra.mrb[0].mxu0 %v213
  %v442 = vpop.f32.mrb[0].mxu0
  %v443 = vadd.f32 0.0, %v442
  %v444 = vpop.f32.mrb[0].mxu0
  %v445 = vpop.f32.mrb[0].mxu0
  %v446 = vadd.f32 0.0, %v445
  %v447 = vpop.f32.mrb[0].mxu0
  %448 = vdwg.mxu0
  %449 = vmatprep.subr.bf16.mxu0 0
  %450 = vmatpush1.bf16.msra.mxu0 %v376
  %451 = vmatprep.subr.bf16.mxu0 0
  %452 = vmatpush1.bf16.msra.mxu0 %v377
  %453 = vmatprep.subr.bf16.mxu0 0
  %454 = vmatpush1.bf16.msra.mxu0 %v378
  %455 = vmatprep.subr.bf16.mxu0 0
  %456 = vmatpush1.bf16.msra.mxu0 %v379
  %457 = vmatprep.subr.bf16.mxu0 0
  %458 = vmatpush1.bf16.msra.mxu0 %v380
  %459 = vmatprep.subr.bf16.mxu0 0
  %460 = vmatpush1.bf16.msra.mxu0 %v381
  %461 = vmatprep.subr.bf16.mxu0 0
  %462 = vmatpush1.bf16.msra.mxu0 %v382
  %463 = vmatprep.subr.bf16.mxu0 0
  %464 = vmatpush1.bf16.msra.mxu0 %v383
  %465 = vmatprep.subr.bf16.mxu0 0
  %466 = vmatpush1.bf16.msra.mxu0 0
  %467 = vmatprep.subr.bf16.mxu0 0
  %468 = vmatpush1.bf16.msra.mxu0 0
  %469 = vmatprep.subr.bf16.mxu0 0
  %470 = vmatpush1.bf16.msra.mxu0 0
  %471 = vmatprep.subr.bf16.mxu0 0
  %472 = vmatpush1.bf16.msra.mxu0 0
  %473 = vmatprep.subr.bf16.mxu0 0
  %474 = vmatpush1.bf16.msra.mxu0 0
  %475 = vmatprep.subr.bf16.mxu0 0
  %476 = vmatpush1.bf16.msra.mxu0 0
  %477 = vmatprep.subr.bf16.mxu0 0
  %478 = vmatpush1.bf16.msra.mxu0 0
  %479 = vmatprep.subr.bf16.mxu0 0
  %480 = vmatpush1.bf16.msra.mxu0 0
  %481 = vmatprep.mubr.bf16.mxu0 0
  %482 = vmatmul.mubr.bf16.gmra.mrb[0].mxu0 %v215
  %v483 = vpop.f32.mrb[0].mxu0
  %v484 = vadd.f32 %v443, %v483
  %v485 = vpop.f32.mrb[0].mxu0
  %v486 = vpop.f32.mrb[0].mxu0
  %v487 = vadd.f32 %v446, %v486
  %v488 = vpop.f32.mrb[0].mxu0
  %489 = vdwg.mxu0
  %v490 = vld [vmem:[%s4 + $0x2] sm:$0x1]
  %v491 = vld [vmem:[%s4 + $0x3] sm:$0x1]
  %v492 = vadd.f32 %v484, %v487
  %v493 = vrot.slane %v492, 4
  %v494 = vadd.f32 %v492, %v493
  %v495 = vrot.slane %v494, 2
  %v496 = vadd.f32 %v494, %v495
  %v497 = vrot.slane %v496, 1
  %v498 = vadd.f32 %v496, %v497
  %v499 = vmul.f32 %v484, %v484
  %v500 = vmul.f32 %v487, %v487
  %v501 = vadd.f32 %v499, %v500
  %v502 = vrot.slane %v501, 4
  %v503 = vadd.f32 %v501, %v502
  %v504 = vrot.slane %v503, 2
  %v505 = vadd.f32 %v503, %v504
  %v506 = vrot.slane %v505, 1
  %v507 = vadd.f32 %v505, %v506
  %v508 = vsel %vm147, %v498, %v507
  %509 = vrot.lane.b32.xlu0 %v508, 4
  %v510 = vpop.permute.xlu0 %509
  %v511 = vadd.f32 %v508, %v510
  %512 = vrot.lane.b32.xlu0 %v511, 8
  %v513 = vpop.permute.xlu0 %512
  %v514 = vadd.f32 %v511, %v513
  %515 = vrot.lane.b32.xlu0 %v514, 16
  %v516 = vpop.permute.xlu0 %515
  %v517 = vadd.f32 %v514, %v516
  %518 = vrot.lane.b32.xlu0 %v517, 32
  %v519 = vpop.permute.xlu0 %518
  %v520 = vadd.f32 %v517, %v519
  %521 = vrot.lane.b32.xlu0 %v520, 64
  %v522 = vpop.permute.xlu0 %521
  %v523 = vadd.f32 %v520, %v522
  %v524 = vmul.f32 %v523, 0.001953125
  %v525 = vmul.f32 %v524, %v524
  %v527 = vrot.slane %v525, 7
  %v529 = vsub.f32 %v524, %v527
  %v530 = vadd.f32 %v529, 1e-05
  %v531 = vrsqrt.pop %v530
  %v533 = vrot.slane %v531, 1
  %v535 = vmul.f32 %v490, %v533
  %v536 = vmul.f32 %v524, %v535
  %v537 = vsub.f32 %v491, %v536
  %v538 = vlaneseq
  %v539 = vshrl.u32 %v538, 7
  %v540 = vsub.s32 0, %v539
  %v541 = vrot.slane %v535, %v540
  %v542 = vmul.f32 %v484, %v541
  %v543 = vmul.f32 %v487, %v541
  %v544 = vlaneseq
  %v545 = vshrl.u32 %v544, 7
  %v546 = vsub.s32 0, %v545
  %v547 = vrot.slane %v537, %v546
  %v548 = vadd.f32 %v542, %v547
  %v549 = vadd.f32 %v543, %v547
  %v550 = vmax.f32 %v548, 0.0
  %v551 = vmax.f32 %v549, 0.0
  %v552 = vpack.c.bf16 %v551, %v550
  %v553 = vld [vmem:[%s3] sm:$0xf]
  %v554 = vld [vmem:[%s3 + $0x4] sm:$0xf]
  %v555 = vld [vmem:[%s3 + $0x8] sm:$0xf]
  %v556 = vld [vmem:[%s3 + $0xc] sm:$0xf]
  %v557 = vld [vmem:[%s3 + $0x10] sm:$0xf]
  %v558 = vld [vmem:[%s3 + $0x14] sm:$0xf]
  %v559 = vld [vmem:[%s3 + $0x18] sm:$0xf]
  %v560 = vld [vmem:[%s3 + $0x1c] sm:$0xf]
  %v561 = vld [vmem:[%s3 + $0x20] sm:$0xf]
  %v562 = vld [vmem:[%s3 + $0x24] sm:$0xf]
  %v563 = vld [vmem:[%s3 + $0x28] sm:$0xf]
  %v564 = vld [vmem:[%s3 + $0x2c] sm:$0xf]
  %v565 = vld [vmem:[%s3 + $0x30] sm:$0xf]
  %v566 = vld [vmem:[%s3 + $0x34] sm:$0xf]
  %v567 = vld [vmem:[%s3 + $0x38] sm:$0xf]
  %v568 = vld [vmem:[%s3 + $0x3c] sm:$0xf]
  %v569 = vld [vmem:[%s4 + $0x4] sm:$0x1]
  %v570 = vlaneseq
  %v571 = vshrl.u32 %v570, 7
  %v572 = vsub.s32 0, %v571
  %v573 = vrot.slane %v569, %v572
  %v590 = vunpack.c.l.b16 %v553
  %v591 = vunpack.c.l.b16 %v554
  %v592 = vunpack.c.l.b16 %v555
  %v593 = vunpack.c.l.b16 %v556
  %v594 = vunpack.c.l.b16 %v557
  %v595 = vunpack.c.l.b16 %v558
  %v596 = vunpack.c.l.b16 %v559
  %v597 = vunpack.c.l.b16 %v560
  %v598 = vunpack.c.l.b16 %v561
  %v599 = vunpack.c.l.b16 %v562
  %v600 = vunpack.c.l.b16 %v563
  %v601 = vunpack.c.l.b16 %v564
  %v602 = vunpack.c.l.b16 %v565
  %v603 = vunpack.c.l.b16 %v566
  %v604 = vunpack.c.l.b16 %v567
  %v605 = vunpack.c.l.b16 %v568
  %v606 = vpack.c.b16 %v591, %v590
  %v607 = vpack.c.b16 %v593, %v592
  %v608 = vpack.c.b16 %v595, %v594
  %v609 = vpack.c.b16 %v597, %v596
  %v610 = vpack.c.b16 %v599, %v598
  %v611 = vpack.c.b16 %v601, %v600
  %v612 = vpack.c.b16 %v603, %v602
  %v613 = vpack.c.b16 %v605, %v604
  %622 = vmatprep.subr.bf16.mxu0 0
  %623 = vmatpush1.bf16.msra.mxu0 %v606
  %624 = vmatprep.subr.bf16.mxu0 0
  %625 = vmatpush1.bf16.msra.mxu0 %v607
  %626 = vmatprep.subr.bf16.mxu0 0
  %627 = vmatpush1.bf16.msra.mxu0 %v608
  %628 = vmatprep.subr.bf16.mxu0 0
  %629 = vmatpush1.bf16.msra.mxu0 %v609
  %630 = vmatprep.subr.bf16.mxu0 0
  %631 = vmatpush1.bf16.msra.mxu0 %v610
  %632 = vmatprep.subr.bf16.mxu0 0
  %633 = vmatpush1.bf16.msra.mxu0 %v611
  %634 = vmatprep.subr.bf16.mxu0 0
  %635 = vmatpush1.bf16.msra.mxu0 %v612
  %636 = vmatprep.subr.bf16.mxu0 0
  %637 = vmatpush1.bf16.msra.mxu0 %v613
  %638 = vmatprep.subr.bf16.mxu0 0
  %639 = vmatpush1.bf16.msra.mxu0 0
  %640 = vmatprep.subr.bf16.mxu0 0
  %641 = vmatpush1.bf16.msra.mxu0 0
  %642 = vmatprep.subr.bf16.mxu0 0
  %643 = vmatpush1.bf16.msra.mxu0 0
  %644 = vmatprep.subr.bf16.mxu0 0
  %645 = vmatpush1.bf16.msra.mxu0 0
  %646 = vmatprep.subr.bf16.mxu0 0
  %647 = vmatpush1.bf16.msra.mxu0 0
  %648 = vmatprep.subr.bf16.mxu0 0
  %649 = vmatpush1.bf16.msra.mxu0 0
  %650 = vmatprep.subr.bf16.mxu0 0
  %651 = vmatpush1.bf16.msra.mxu0 0
  %652 = vmatprep.subr.bf16.mxu0 0
  %653 = vmatpush1.bf16.msra.mxu0 0
  %654 = vmatprep.mubr.bf16.mxu0 0
  %655 = vmatmul.mubr.bf16.gmra.mrb[0].mxu0 %v552
  %v656 = vpop.f32.mrb[0].mxu0
  %v657 = vadd.f32 %v573, %v656
  %v658 = vpop.f32.mrb[0].mxu0
  %v659 = vpop.f32.mrb[0].mxu0
  %v660 = vadd.f32 %v573, %v659
  %v661 = vpop.f32.mrb[0].mxu0
  %662 = vdwg.mxu0
  %v663 = vadd.f32 %v657, %v21
  %v664 = vadd.f32 %v660, %v22
  %665 = vst [vmem:[%s5] sm:$0xff] %v663
  %666 = vst [vmem:[%s5 + $0x8] sm:$0xff] %v664
  // Predicated region
  $region22: #{resblock_forward.1} parent=0 // pred_check
    _
  $region23: #{resblock_forward.1} parent=0 // pred_check_branch
    %668 = sbr.rel (0) target = $region25
  $region24: #{resblock_forward.1} parent=0 // pred_region
    _
  $region25: #{resblock_forward.1} parent=0 // pred_fallthru
    _
  // Predicated region
  $region26: #{resblock_forward.1} parent=0 // pred_check
    _
  $region27: #{resblock_forward.1} parent=0 // pred_check_branch
    %670 = sbr.rel (0) target = $region29
  $region28: #{resblock_forward.1} parent=0 // pred_region
    _
  $region29: #{resblock_forward.1} parent=0 // pred_fallthru
    _

</llo_original>
